<compile_context>
chip_gen: v7x
topology: tpu7x:2x2x1
jax: 0.10.0
libtpu: 0.0.40
codegen_flags: <defaults>
</compile_context>

<pallas_src>
import functools

import jax
import jax.numpy as jnp
from jax.experimental import pallas as pl
from jax.experimental.pallas import tpu as pltpu


# --------------------------- fused forward kernel ----------------------------
def _make_fused_kernel(num_layers, num_relations):
    """Builds a kernel: refs = [x, a_flat, (w, root, bias)*L, pool, fc_w, fc_b, out]."""

    def kernel(*refs):
        x_ref, a_ref = refs[0], refs[1]
        layer_refs = refs[2:2 + 3 * num_layers]
        p_ref, fw_ref, fb_ref, o_ref = refs[2 + 3 * num_layers:]

        a = a_ref[...]          # (N, R*N), A_flat[i, r*N + j] = A_norm[r, i, j]
        h = x_ref[...]          # (N, Fin)

        for l in range(num_layers):
            w_ref, root_ref, b_ref = layer_refs[3 * l:3 * l + 3]
            # Stack per-relation transforms:  xw_stack[r*N + j, :] = (h @ W[r])[j, :]
            xw_stack = jnp.concatenate(
                [jnp.dot(h, w_ref[r], preferred_element_type=jnp.float32)
                 for r in range(num_relations)],
                axis=0)                                          # (R*N, H)
            # sum_r A[r] @ (h @ W[r])  ==  A_flat @ xw_stack  (one MXU contraction)
            h = (jnp.dot(a, xw_stack, preferred_element_type=jnp.float32)
                 + jnp.dot(h, root_ref[...], preferred_element_type=jnp.float32)
                 + b_ref[...])
            h = jnp.maximum(h, 0.0)                              # ReLU (after every conv)

        # global_mean_pool (pool matrix already holds 1/count weights) + fc
        pooled = jnp.dot(p_ref[...], h, preferred_element_type=jnp.float32)   # (G, H)
        o_ref[...] = (jnp.dot(pooled, fw_ref[...], preferred_element_type=jnp.float32)
                      + fb_ref[...]).astype(o_ref.dtype)

    return kernel


def rgcn_graph_fused(params, x, a_flat, pool_mat):
    """Single pallas_call for the whole RGCN_graph forward pass."""
    num_layers = len(params["convs"])
    num_relations = params["convs"][0][0].shape[0]
    num_graphs = pool_mat.shape[0]
    num_classes = params["fc_w"].shape[1]

    inputs = [x, a_flat]
    in_specs = [
        pl.BlockSpec(x.shape, lambda i: (0, 0)),
        pl.BlockSpec(a_flat.shape, lambda i: (0, 0)),
    ]
    for (w, w_root, bias) in params["convs"]:
        inputs += [w, w_root, bias]
        in_specs += [
            pl.BlockSpec(w.shape, lambda i: (0, 0, 0)),
            pl.BlockSpec(w_root.shape, lambda i: (0, 0)),
            pl.BlockSpec(bias.shape, lambda i: (0, 0)),
        ]
    inputs += [pool_mat, params["fc_w"], params["fc_b"]]
    in_specs += [
        pl.BlockSpec(pool_mat.shape, lambda i: (0, 0)),
        pl.BlockSpec(params["fc_w"].shape, lambda i: (0, 0)),
        pl.BlockSpec(params["fc_b"].shape, lambda i: (0, 0)),
    ]

    kernel = _make_fused_kernel(num_layers, num_relations)
    return pl.pallas_call(
        kernel,
        out_shape=jax.ShapeDtypeStruct((num_graphs, num_classes), jnp.float32),
        grid=(1,),
        in_specs=in_specs,
        out_specs=pl.BlockSpec((num_graphs, num_classes), lambda i: (0, 0)),
        compiler_params=pltpu.CompilerParams(
            dimension_semantics=("arbitrary",)),
    )(*inputs)


# --------------------------------- glue -------------------------------------
def build_dense_graph(edge_index, edge_type, num_nodes, num_relations):
    """Dense normalized per-relation adjacency, A[r, dst, src] = 1/deg_r(dst)."""
    src, dst = edge_index[0], edge_index[1]
    adj = jnp.zeros((num_relations, num_nodes, num_nodes), jnp.float32)
    adj = adj.at[edge_type, dst, src].add(1.0)
    deg = jnp.zeros((num_relations, num_nodes), jnp.float32)
    deg = deg.at[edge_type, dst].add(1.0)
    return adj / jnp.maximum(deg, 1.0)[:, :, None]


def build_pool_matrix(batch, num_graphs):
    one_hot = (batch[None, :] == jnp.arange(num_graphs)[:, None]).astype(jnp.float32)
    counts = jnp.maximum(one_hot.sum(axis=1, keepdims=True), 1.0)
    return one_hot / counts


def rgcn_graph_forward(params, x, edge_index, edge_type, batch,
                       num_graphs, num_relations):
    N = x.shape[0]
    a_norm = build_dense_graph(edge_index, edge_type, N, num_relations)  # (R, N, N)
    # Flatten so the kernel can collapse the relation sum into one matmul:
    # a_flat[i, r*N + j] = a_norm[r, i, j]
    a_flat = jnp.transpose(a_norm, (1, 0, 2)).reshape(N, num_relations * N)
    pool_mat = build_pool_matrix(batch, num_graphs)
    return rgcn_graph_fused(params, x, a_flat, pool_mat)


# ------------------------------ param init ----------------------------------
def glorot(key, shape):
    fan_in, fan_out = shape[-2], shape[-1]
    lim = jnp.sqrt(6.0 / (fan_in + fan_out))
    return jax.random.uniform(key, shape, jnp.float32, -lim, lim)


def init_params(key, num_node_features, num_classes, num_relations,
                num_layers=2, hidden_channels=16):
    params = {"convs": []}
    in_dim = num_node_features
    for _ in range(num_layers):
        key, k1, k2 = jax.random.split(key, 3)
        w = glorot(k1, (num_relations, in_dim, hidden_channels))
        w_root = glorot(k2, (in_dim, hidden_channels))
        bias = jnp.zeros((1, hidden_channels), jnp.float32)
        params["convs"].append((w, w_root, bias))
        in_dim = hidden_channels
    key, kf = jax.random.split(key)
    params["fc_w"] = glorot(kf, (in_dim, num_classes))
    params["fc_b"] = jnp.zeros((1, num_classes), jnp.float32)
    return params


# --------------------------------- main -------------------------------------
if __name__ == "__main__":
    NUM_NODES = 32
    NUM_EDGES = 64
    NUM_FEATURES = 8
    HIDDEN = 16
    NUM_CLASSES = 4
    NUM_RELATIONS = 3
    NUM_GRAPHS = 2
    NUM_LAYERS = 2

    key = jax.random.PRNGKey(0)
    kx, ke, kt, kp = jax.random.split(key, 4)

    x = jax.random.normal(kx, (NUM_NODES, NUM_FEATURES), jnp.float32)
    edge_index = jax.random.randint(ke, (2, NUM_EDGES), 0, NUM_NODES, jnp.int32)
    edge_type = jax.random.randint(kt, (NUM_EDGES,), 0, NUM_RELATIONS, jnp.int32)
    # batch assignment (sorted, PyG-style): first half graph 0, second half graph 1
    batch = jnp.concatenate(
        [jnp.zeros((NUM_NODES // 2,), jnp.int32),
         jnp.ones((NUM_NODES - NUM_NODES // 2,), jnp.int32)]
    )

    params = init_params(kp, NUM_FEATURES, NUM_CLASSES, NUM_RELATIONS,
                         num_layers=NUM_LAYERS, hidden_channels=HIDDEN)

    out = rgcn_graph_forward(params, x, edge_index, edge_type, batch,
                             NUM_GRAPHS, NUM_RELATIONS)
    jax.block_until_ready(out)
    assert out.shape == (NUM_GRAPHS, NUM_CLASSES)
    print("KERNEL_OK")
</pallas_src>

<mosaic_0001>
module attributes {stable_mosaic.version = 11 : i64} {
  func.func @kernel(%arg0: i32, %arg1: memref<32x8xf32, #tpu.memory_space<vmem>>, %arg2: memref<32x96xf32, #tpu.memory_space<vmem>>, %arg3: memref<3x8x16xf32, #tpu.memory_space<vmem>>, %arg4: memref<8x16xf32, #tpu.memory_space<vmem>>, %arg5: memref<1x16xf32, #tpu.memory_space<vmem>>, %arg6: memref<3x16x16xf32, #tpu.memory_space<vmem>>, %arg7: memref<16x16xf32, #tpu.memory_space<vmem>>, %arg8: memref<1x16xf32, #tpu.memory_space<vmem>>, %arg9: memref<2x32xf32, #tpu.memory_space<vmem>>, %arg10: memref<16x4xf32, #tpu.memory_space<vmem>>, %arg11: memref<1x4xf32, #tpu.memory_space<vmem>>, %arg12: memref<2x4xf32, #tpu.memory_space<vmem>>) attributes {dimension_semantics = [#tpu.dimension_semantics<arbitrary>], iteration_bounds = array<i64: 1>, scalar_prefetch = 0 : i64, scratch_operands = 0 : i64, tpu.core_type = #tpu.core_type<tc>, window_params = [{pipeline_mode = #tpu.pipeline_mode<synchronous>, transform_indices = @transform_0, window_bounds = array<i64: 32, 8>}, {pipeline_mode = #tpu.pipeline_mode<synchronous>, transform_indices = @transform_1, window_bounds = array<i64: 32, 96>}, {pipeline_mode = #tpu.pipeline_mode<synchronous>, transform_indices = @transform_2, window_bounds = array<i64: 3, 8, 16>}, {pipeline_mode = #tpu.pipeline_mode<synchronous>, transform_indices = @transform_3, window_bounds = array<i64: 8, 16>}, {pipeline_mode = #tpu.pipeline_mode<synchronous>, transform_indices = @transform_4, window_bounds = array<i64: 1, 16>}, {pipeline_mode = #tpu.pipeline_mode<synchronous>, transform_indices = @transform_5, window_bounds = array<i64: 3, 16, 16>}, {pipeline_mode = #tpu.pipeline_mode<synchronous>, transform_indices = @transform_6, window_bounds = array<i64: 16, 16>}, {pipeline_mode = #tpu.pipeline_mode<synchronous>, transform_indices = @transform_7, window_bounds = array<i64: 1, 16>}, {pipeline_mode = #tpu.pipeline_mode<synchronous>, transform_indices = @transform_8, window_bounds = array<i64: 2, 32>}, {pipeline_mode = #tpu.pipeline_mode<synchronous>, transform_indices = @transform_9, window_bounds = array<i64: 16, 4>}, {pipeline_mode = #tpu.pipeline_mode<synchronous>, transform_indices = @transform_10, window_bounds = array<i64: 1, 4>}, {pipeline_mode = #tpu.pipeline_mode<synchronous>, transform_indices = @transform_11, window_bounds = array<i64: 2, 4>}]} {
    %c0 = arith.constant 0 : index
    %c0_0 = arith.constant 0 : index
    %0 = vector.load %arg2[%c0, %c0_0] : memref<32x96xf32, #tpu.memory_space<vmem>>, vector<32x96xf32>
    %c0_1 = arith.constant 0 : index
    %c0_2 = arith.constant 0 : index
    %1 = vector.load %arg1[%c0_1, %c0_2] : memref<32x8xf32, #tpu.memory_space<vmem>>, vector<32x8xf32>
    %c0_3 = arith.constant 0 : index
    %c0_4 = arith.constant 0 : index
    %c0_5 = arith.constant 0 : index
    %2 = vector.load %arg3[%c0_3, %c0_4, %c0_5] : memref<3x8x16xf32, #tpu.memory_space<vmem>>, vector<1x8x16xf32>
    %3 = vector.shape_cast %2 : vector<1x8x16xf32> to vector<8x16xf32>
    %cst = arith.constant dense<0.000000e+00> : vector<32x16xf32>
    %4 = tpu.matmul %1, %3, %cst {dimension_numbers = #tpu.dot_dimension_numbers<[1], [0], [0], [1], [0, 0, 1, 1], [], []>} : vector<32x8xf32>, vector<8x16xf32>, vector<32x16xf32> -> vector<32x16xf32>
    %c1 = arith.constant 1 : index
    %c0_6 = arith.constant 0 : index
    %c0_7 = arith.constant 0 : index
    %5 = vector.load %arg3[%c1, %c0_6, %c0_7] : memref<3x8x16xf32, #tpu.memory_space<vmem>>, vector<1x8x16xf32>
    %6 = vector.shape_cast %5 : vector<1x8x16xf32> to vector<8x16xf32>
    %cst_8 = arith.constant dense<0.000000e+00> : vector<32x16xf32>
    %7 = tpu.matmul %1, %6, %cst_8 {dimension_numbers = #tpu.dot_dimension_numbers<[1], [0], [0], [1], [0, 0, 1, 1], [], []>} : vector<32x8xf32>, vector<8x16xf32>, vector<32x16xf32> -> vector<32x16xf32>
    %c2 = arith.constant 2 : index
    %c0_9 = arith.constant 0 : index
    %c0_10 = arith.constant 0 : index
    %8 = vector.load %arg3[%c2, %c0_9, %c0_10] : memref<3x8x16xf32, #tpu.memory_space<vmem>>, vector<1x8x16xf32>
    %9 = vector.shape_cast %8 : vector<1x8x16xf32> to vector<8x16xf32>
    %cst_11 = arith.constant dense<0.000000e+00> : vector<32x16xf32>
    %10 = tpu.matmul %1, %9, %cst_11 {dimension_numbers = #tpu.dot_dimension_numbers<[1], [0], [0], [1], [0, 0, 1, 1], [], []>} : vector<32x8xf32>, vector<8x16xf32>, vector<32x16xf32> -> vector<32x16xf32>
    %11 = tpu.concatenate %4, %7, %10 in 0 : vector<32x16xf32>, vector<32x16xf32>, vector<32x16xf32> -> vector<96x16xf32>
    %cst_12 = arith.constant dense<0.000000e+00> : vector<32x16xf32>
    %12 = tpu.matmul %0, %11, %cst_12 {dimension_numbers = #tpu.dot_dimension_numbers<[1], [0], [0], [1], [0, 0, 1, 1], [], []>} : vector<32x96xf32>, vector<96x16xf32>, vector<32x16xf32> -> vector<32x16xf32>
    %c0_13 = arith.constant 0 : index
    %c0_14 = arith.constant 0 : index
    %13 = vector.load %arg4[%c0_13, %c0_14] : memref<8x16xf32, #tpu.memory_space<vmem>>, vector<8x16xf32>
    %cst_15 = arith.constant dense<0.000000e+00> : vector<32x16xf32>
    %14 = tpu.matmul %1, %13, %cst_15 {dimension_numbers = #tpu.dot_dimension_numbers<[1], [0], [0], [1], [0, 0, 1, 1], [], []>} : vector<32x8xf32>, vector<8x16xf32>, vector<32x16xf32> -> vector<32x16xf32>
    %15 = arith.addf %12, %14 : vector<32x16xf32>
    %c0_16 = arith.constant 0 : index
    %c0_17 = arith.constant 0 : index
    %16 = vector.load %arg5[%c0_16, %c0_17] : memref<1x16xf32, #tpu.memory_space<vmem>>, vector<1x16xf32>
    %17 = vector.broadcast %16 : vector<1x16xf32> to vector<32x16xf32>
    %18 = arith.addf %15, %17 : vector<32x16xf32>
    %cst_18 = arith.constant 0.000000e+00 : f32
    %19 = vector.broadcast %cst_18 : f32 to vector<32x16xf32>
    %20 = arith.maximumf %18, %19 : vector<32x16xf32>
    %c0_19 = arith.constant 0 : index
    %c0_20 = arith.constant 0 : index
    %c0_21 = arith.constant 0 : index
    %21 = vector.load %arg6[%c0_19, %c0_20, %c0_21] : memref<3x16x16xf32, #tpu.memory_space<vmem>>, vector<1x16x16xf32>
    %22 = vector.shape_cast %21 : vector<1x16x16xf32> to vector<16x16xf32>
    %cst_22 = arith.constant dense<0.000000e+00> : vector<32x16xf32>
    %23 = tpu.matmul %20, %22, %cst_22 {dimension_numbers = #tpu.dot_dimension_numbers<[1], [0], [0], [1], [0, 0, 1, 1], [], []>} : vector<32x16xf32>, vector<16x16xf32>, vector<32x16xf32> -> vector<32x16xf32>
    %c1_23 = arith.constant 1 : index
    %c0_24 = arith.constant 0 : index
    %c0_25 = arith.constant 0 : index
    %24 = vector.load %arg6[%c1_23, %c0_24, %c0_25] : memref<3x16x16xf32, #tpu.memory_space<vmem>>, vector<1x16x16xf32>
    %25 = vector.shape_cast %24 : vector<1x16x16xf32> to vector<16x16xf32>
    %cst_26 = arith.constant dense<0.000000e+00> : vector<32x16xf32>
    %26 = tpu.matmul %20, %25, %cst_26 {dimension_numbers = #tpu.dot_dimension_numbers<[1], [0], [0], [1], [0, 0, 1, 1], [], []>} : vector<32x16xf32>, vector<16x16xf32>, vector<32x16xf32> -> vector<32x16xf32>
    %c2_27 = arith.constant 2 : index
    %c0_28 = arith.constant 0 : index
    %c0_29 = arith.constant 0 : index
    %27 = vector.load %arg6[%c2_27, %c0_28, %c0_29] : memref<3x16x16xf32, #tpu.memory_space<vmem>>, vector<1x16x16xf32>
    %28 = vector.shape_cast %27 : vector<1x16x16xf32> to vector<16x16xf32>
    %cst_30 = arith.constant dense<0.000000e+00> : vector<32x16xf32>
    %29 = tpu.matmul %20, %28, %cst_30 {dimension_numbers = #tpu.dot_dimension_numbers<[1], [0], [0], [1], [0, 0, 1, 1], [], []>} : vector<32x16xf32>, vector<16x16xf32>, vector<32x16xf32> -> vector<32x16xf32>
    %30 = tpu.concatenate %23, %26, %29 in 0 : vector<32x16xf32>, vector<32x16xf32>, vector<32x16xf32> -> vector<96x16xf32>
    %cst_31 = arith.constant dense<0.000000e+00> : vector<32x16xf32>
    %31 = tpu.matmul %0, %30, %cst_31 {dimension_numbers = #tpu.dot_dimension_numbers<[1], [0], [0], [1], [0, 0, 1, 1], [], []>} : vector<32x96xf32>, vector<96x16xf32>, vector<32x16xf32> -> vector<32x16xf32>
    %c0_32 = arith.constant 0 : index
    %c0_33 = arith.constant 0 : index
    %32 = vector.load %arg7[%c0_32, %c0_33] : memref<16x16xf32, #tpu.memory_space<vmem>>, vector<16x16xf32>
    %cst_34 = arith.constant dense<0.000000e+00> : vector<32x16xf32>
    %33 = tpu.matmul %20, %32, %cst_34 {dimension_numbers = #tpu.dot_dimension_numbers<[1], [0], [0], [1], [0, 0, 1, 1], [], []>} : vector<32x16xf32>, vector<16x16xf32>, vector<32x16xf32> -> vector<32x16xf32>
    %34 = arith.addf %31, %33 : vector<32x16xf32>
    %c0_35 = arith.constant 0 : index
    %c0_36 = arith.constant 0 : index
    %35 = vector.load %arg8[%c0_35, %c0_36] : memref<1x16xf32, #tpu.memory_space<vmem>>, vector<1x16xf32>
    %36 = vector.broadcast %35 : vector<1x16xf32> to vector<32x16xf32>
    %37 = arith.addf %34, %36 : vector<32x16xf32>
    %cst_37 = arith.constant 0.000000e+00 : f32
    %38 = vector.broadcast %cst_37 : f32 to vector<32x16xf32>
    %39 = arith.maximumf %37, %38 : vector<32x16xf32>
    %c0_38 = arith.constant 0 : index
    %c0_39 = arith.constant 0 : index
    %40 = vector.load %arg9[%c0_38, %c0_39] : memref<2x32xf32, #tpu.memory_space<vmem>>, vector<2x32xf32>
    %cst_40 = arith.constant dense<0.000000e+00> : vector<2x16xf32>
    %41 = tpu.matmul %40, %39, %cst_40 {dimension_numbers = #tpu.dot_dimension_numbers<[1], [0], [0], [1], [0, 0, 1, 1], [], []>} : vector<2x32xf32>, vector<32x16xf32>, vector<2x16xf32> -> vector<2x16xf32>
    %c0_41 = arith.constant 0 : index
    %c0_42 = arith.constant 0 : index
    %42 = vector.load %arg10[%c0_41, %c0_42] : memref<16x4xf32, #tpu.memory_space<vmem>>, vector<16x4xf32>
    %cst_43 = arith.constant dense<0.000000e+00> : vector<2x4xf32>
    %43 = tpu.matmul %41, %42, %cst_43 {dimension_numbers = #tpu.dot_dimension_numbers<[1], [0], [0], [1], [0, 0, 1, 1], [], []>} : vector<2x16xf32>, vector<16x4xf32>, vector<2x4xf32> -> vector<2x4xf32>
    %c0_44 = arith.constant 0 : index
    %c0_45 = arith.constant 0 : index
    %44 = vector.load %arg11[%c0_44, %c0_45] : memref<1x4xf32, #tpu.memory_space<vmem>>, vector<1x4xf32>
    %45 = vector.broadcast %44 : vector<1x4xf32> to vector<2x4xf32>
    %46 = arith.addf %43, %45 : vector<2x4xf32>
    %c0_46 = arith.constant 0 : index
    %c0_47 = arith.constant 0 : index
    %47 = vector.load %arg12[%c0_46, %c0_47] : memref<2x4xf32, #tpu.memory_space<vmem>>, vector<2x4xf32>
    tpu.vector_store %arg12[%c0_46, %c0_47], %46 {strides = array<i32>} : memref<2x4xf32, #tpu.memory_space<vmem>>, vector<2x4xf32>,
    return
  }
  func.func @transform_0(%arg0: i32) -> (i32, i32) {
    %c0_i32 = arith.constant 0 : i32
    %c0_i32_0 = arith.constant 0 : i32
    %c0_i32_1 = arith.constant 0 : i32
    return %c0_i32, %c0_i32_0 : i32, i32
  }
  func.func @transform_1(%arg0: i32) -> (i32, i32) {
    %c0_i32 = arith.constant 0 : i32
    %c0_i32_0 = arith.constant 0 : i32
    %c0_i32_1 = arith.constant 0 : i32
    return %c0_i32, %c0_i32_0 : i32, i32
  }
  func.func @transform_2(%arg0: i32) -> (i32, i32, i32) {
    %c0_i32 = arith.constant 0 : i32
    %c0_i32_0 = arith.constant 0 : i32
    %c0_i32_1 = arith.constant 0 : i32
    %c0_i32_2 = arith.constant 0 : i32
    return %c0_i32, %c0_i32_0, %c0_i32_1 : i32, i32, i32
  }
  func.func @transform_3(%arg0: i32) -> (i32, i32) {
    %c0_i32 = arith.constant 0 : i32
    %c0_i32_0 = arith.constant 0 : i32
    %c0_i32_1 = arith.constant 0 : i32
    return %c0_i32, %c0_i32_0 : i32, i32
  }
  func.func @transform_4(%arg0: i32) -> (i32, i32) {
    %c0_i32 = arith.constant 0 : i32
    %c0_i32_0 = arith.constant 0 : i32
    %c0_i32_1 = arith.constant 0 : i32
    return %c0_i32, %c0_i32_0 : i32, i32
  }
  func.func @transform_5(%arg0: i32) -> (i32, i32, i32) {
    %c0_i32 = arith.constant 0 : i32
    %c0_i32_0 = arith.constant 0 : i32
    %c0_i32_1 = arith.constant 0 : i32
    %c0_i32_2 = arith.constant 0 : i32
    return %c0_i32, %c0_i32_0, %c0_i32_1 : i32, i32, i32
  }
  func.func @transform_6(%arg0: i32) -> (i32, i32) {
    %c0_i32 = arith.constant 0 : i32
    %c0_i32_0 = arith.constant 0 : i32
    %c0_i32_1 = arith.constant 0 : i32
    return %c0_i32, %c0_i32_0 : i32, i32
  }
  func.func @transform_7(%arg0: i32) -> (i32, i32) {
    %c0_i32 = arith.constant 0 : i32
    %c0_i32_0 = arith.constant 0 : i32
    %c0_i32_1 = arith.constant 0 : i32
    return %c0_i32, %c0_i32_0 : i32, i32
  }
  func.func @transform_8(%arg0: i32) -> (i32, i32) {
    %c0_i32 = arith.constant 0 : i32
    %c0_i32_0 = arith.constant 0 : i32
    %c0_i32_1 = arith.constant 0 : i32
    return %c0_i32, %c0_i32_0 : i32, i32
  }
  func.func @transform_9(%arg0: i32) -> (i32, i32) {
    %c0_i32 = arith.constant 0 : i32
    %c0_i32_0 = arith.constant 0 : i32
    %c0_i32_1 = arith.constant 0 : i32
    return %c0_i32, %c0_i32_0 : i32, i32
  }
  func.func @transform_10(%arg0: i32) -> (i32, i32) {
    %c0_i32 = arith.constant 0 : i32
    %c0_i32_0 = arith.constant 0 : i32
    %c0_i32_1 = arith.constant 0 : i32
    return %c0_i32, %c0_i32_0 : i32, i32
  }
  func.func @transform_11(%arg0: i32) -> (i32, i32) {
    %c0_i32 = arith.constant 0 : i32
    %c0_i32_0 = arith.constant 0 : i32
    %c0_i32_1 = arith.constant 0 : i32
    return %c0_i32, %c0_i32_0 : i32, i32
  }
}

</mosaic_0001>

<llo_original>
// kernel: tpu_custom_call.1
$region0: #{tpu_custom_call.1}
  #allocation0 [shape = 'u32[]', space=smem, size = 0x4, offset = 0x4, fixed_abs, tag = 'smem constant byte address 0x4 - core index']
  #allocation1 [shape = 'u32[144,128]{1,0:T(1,128)}', space=vmem, size = 0x12000, scoped, tag = 'internal scratch']
  %s0 = inlined_call_operand.vmem [shape: f32[32,8], index: 0, kind: input, shape index: {}]
  %s1 = inlined_call_operand.hbm [shape: f32[32,96], index: 1, kind: input, shape index: {}]
  %s2 = inlined_call_operand.vmem [shape: f32[3,8,16], index: 2, kind: input, shape index: {}]
  %s3 = inlined_call_operand.hbm [shape: f32[8,16], index: 3, kind: input, shape index: {}]
  %s4 = inlined_call_operand.vmem [shape: f32[1,16], index: 4, kind: input, shape index: {}]
  %s5 = inlined_call_operand.vmem [shape: f32[3,16,16], index: 5, kind: input, shape index: {}]
  %s6 = inlined_call_operand.hbm [shape: f32[16,16], index: 6, kind: input, shape index: {}]
  %s7 = inlined_call_operand.vmem [shape: f32[1,16], index: 7, kind: input, shape index: {}]
  %s8 = inlined_call_operand.vmem [shape: f32[2,32], index: 8, kind: input, shape index: {}]
  %s9 = inlined_call_operand.vmem [shape: f32[16,4], index: 9, kind: input, shape index: {}]
  %s10 = inlined_call_operand.vmem [shape: f32[1,4], index: 10, kind: input, shape index: {}]
  %s11 = inlined_call_operand.hbm [shape: f32[2,4], index: 11, kind: output, shape index: {}]
  %s12 = sld [smem:[#allocation0]]
  $region66: #{tpu_custom_call.1} parent=0
    _
  %s14 = ssub.s32 1, %s12
  %s15 = scalar_select 0, %s14, %s12
  $region1: #{tpu_custom_call.1} parent=0
    #allocation2 [shape = 'u8[16384]{0}', space=vmem, size = 0x4000, scoped, tag = 'input window, operand 1, single buffered']
    #allocation3 [shape = 's32[1]{0}', space=sflag, size = 0x4, scoped, tag = 'scoped memory for tpu_custom_call.1']
    #allocation4 [shape = 's32[1]{0}', space=sflag, size = 0x4, scoped, tag = 'scoped memory for tpu_custom_call.1']
    #allocation5 [shape = 'u8[4096]{0}', space=vmem, size = 0x1000, scoped, tag = 'input window, operand 3, single buffered']
    #allocation6 [shape = 's32[1]{0}', space=sflag, size = 0x4, scoped, tag = 'scoped memory for tpu_custom_call.1']
    #allocation7 [shape = 'u8[8192]{0}', space=vmem, size = 0x2000, scoped, tag = 'input window, operand 6, single buffered']
    #allocation8 [shape = 'u8[1024]{0}', space=vmem, size = 0x400, scoped, tag = 'output window, operand 0, single buffered']
    %16 = vsyncpa [#allocation3], 0
    %17 = vsyncpa [#allocation6], 0
    %18 = vsyncpa [#allocation4], 0
    // Predicated region
    $region2: #{tpu_custom_call.1} parent=1 // pred_check
      _
    $region3: #{tpu_custom_call.1} parent=1 // pred_check_branch
      %20 = sbr.rel (0) target = $region5
    $region4: #{tpu_custom_call.1} parent=1 // pred_region
      _
    $region5: #{tpu_custom_call.1} parent=1 // pred_fallthru
      _
    // Predicated region
    $region6: #{tpu_custom_call.1} parent=1 // pred_check
      _
    $region7: #{tpu_custom_call.1} parent=1 // pred_check_branch
      %22 = sbr.rel (0) target = $region9
    $region8: #{tpu_custom_call.1} parent=1 // pred_region
      %s24 = ssub.s32 512, 512
      %25 = vsyncadd [#allocation3], %s24
      %s26 = sshll.u32 [#allocation2], 4
      %s27 = int_to_ptr.vmem [resolvable:$true] %s26
      %32 = dma.hbm_to_vmem [thread:$0]  %s1, 512, %s27, [#allocation3], 128, 128, 8
    $region9: #{tpu_custom_call.1} parent=1 // pred_fallthru
      _
    // Predicated region
    $region10: #{tpu_custom_call.1} parent=1 // pred_check
      _
    $region11: #{tpu_custom_call.1} parent=1 // pred_check_branch
      %34 = sbr.rel (0) target = $region13
    $region12: #{tpu_custom_call.1} parent=1 // pred_region
      _
    $region13: #{tpu_custom_call.1} parent=1 // pred_fallthru
      _
    // Predicated region
    $region14: #{tpu_custom_call.1} parent=1 // pred_check
      _
    $region15: #{tpu_custom_call.1} parent=1 // pred_check_branch
      %36 = sbr.rel (0) target = $region17
    $region16: #{tpu_custom_call.1} parent=1 // pred_region
      %s38 = ssub.s32 128, 128
      %39 = vsyncadd [#allocation6], %s38
      %s41 = sshll.u32 [#allocation5], 4
      %s42 = int_to_ptr.vmem [resolvable:$true] %s41
      %44 = dma.hbm_to_vmem [thread:$0]  %s3, 128, %s42, [#allocation6]
    $region17: #{tpu_custom_call.1} parent=1 // pred_fallthru
      _
    // Predicated region
    $region18: #{tpu_custom_call.1} parent=1 // pred_check
      _
    $region19: #{tpu_custom_call.1} parent=1 // pred_check_branch
      %46 = sbr.rel (0) target = $region21
    $region20: #{tpu_custom_call.1} parent=1 // pred_region
      _
    $region21: #{tpu_custom_call.1} parent=1 // pred_fallthru
      _
    // Predicated region
    $region22: #{tpu_custom_call.1} parent=1 // pred_check
      _
    $region23: #{tpu_custom_call.1} parent=1 // pred_check_branch
      %48 = sbr.rel (0) target = $region25
    $region24: #{tpu_custom_call.1} parent=1 // pred_region
      _
    $region25: #{tpu_custom_call.1} parent=1 // pred_fallthru
      _
    // Predicated region
    $region26: #{tpu_custom_call.1} parent=1 // pred_check
      _
    $region27: #{tpu_custom_call.1} parent=1 // pred_check_branch
      %50 = sbr.rel (0) target = $region29
    $region28: #{tpu_custom_call.1} parent=1 // pred_region
      %s52 = ssub.s32 256, 256
      %53 = vsyncadd [#allocation6], %s52
      %s54 = sshll.u32 [#allocation7], 4
      %s55 = int_to_ptr.vmem [resolvable:$true] %s54
      %60 = dma.hbm_to_vmem [thread:$0]  %s6, 256, %s55, [#allocation6], 128, 128, 8
    $region29: #{tpu_custom_call.1} parent=1 // pred_fallthru
      _
    // Predicated region
    $region30: #{tpu_custom_call.1} parent=1 // pred_check
      _
    $region31: #{tpu_custom_call.1} parent=1 // pred_check_branch
      %62 = sbr.rel (0) target = $region33
    $region32: #{tpu_custom_call.1} parent=1 // pred_region
      _
    $region33: #{tpu_custom_call.1} parent=1 // pred_fallthru
      _
    // Predicated region
    $region34: #{tpu_custom_call.1} parent=1 // pred_check
      _
    $region35: #{tpu_custom_call.1} parent=1 // pred_check_branch
      %64 = sbr.rel (0) target = $region37
    $region36: #{tpu_custom_call.1} parent=1 // pred_region
      _
    $region37: #{tpu_custom_call.1} parent=1 // pred_fallthru
      _
    // Predicated region
    $region38: #{tpu_custom_call.1} parent=1 // pred_check
      _
    $region39: #{tpu_custom_call.1} parent=1 // pred_check_branch
      %66 = sbr.rel (0) target = $region41
    $region40: #{tpu_custom_call.1} parent=1 // pred_region
      _
    $region41: #{tpu_custom_call.1} parent=1 // pred_fallthru
      _
    // Predicated region
    $region42: #{tpu_custom_call.1} parent=1 // pred_check
      _
    $region43: #{tpu_custom_call.1} parent=1 // pred_check_branch
      %68 = sbr.rel (0) target = $region45
    $region44: #{tpu_custom_call.1} parent=1 // pred_region
      _
    $region45: #{tpu_custom_call.1} parent=1 // pred_fallthru
      _
    // Predicated region
    $region46: #{tpu_custom_call.1} parent=1 // pred_check
      _
    $region47: #{tpu_custom_call.1} parent=1 // pred_check_branch
      %70 = sbr.rel (0) target = $region49
    $region48: #{tpu_custom_call.1} parent=1 // pred_region
      %71 = dma.done [#allocation3], 512
    $region49: #{tpu_custom_call.1} parent=1 // pred_fallthru
      _
    // Predicated region
    $region50: #{tpu_custom_call.1} parent=1 // pred_check
      _
    $region51: #{tpu_custom_call.1} parent=1 // pred_check_branch
      %73 = sbr.rel (0) target = $region53
    $region52: #{tpu_custom_call.1} parent=1 // pred_region
      %74 = dma.done [#allocation6], 128
    $region53: #{tpu_custom_call.1} parent=1 // pred_fallthru
      _
    // Predicated region
    $region54: #{tpu_custom_call.1} parent=1 // pred_check
      _
    $region55: #{tpu_custom_call.1} parent=1 // pred_check_branch
      %76 = sbr.rel (0) target = $region57
    $region56: #{tpu_custom_call.1} parent=1 // pred_region
      %77 = dma.done [#allocation6], 256
    $region57: #{tpu_custom_call.1} parent=1 // pred_fallthru
      _
    %v78 = vld [vmem:[#allocation2] sm:$0xff]
    %v79 = vld [vmem:[#allocation2 + $0x8] sm:$0xff]
    %v80 = vld [vmem:[#allocation2 + $0x10] sm:$0xff]
    %v81 = vld [vmem:[#allocation2 + $0x18] sm:$0xff]
    %v82 = vld [vmem:[%s0] sm:$0xff]
    %v83 = vld [vmem:[%s0 + $0x8] sm:$0xff]
    %v84 = vld [vmem:[%s0 + $0x10] sm:$0xff]
    %v85 = vld [vmem:[%s0 + $0x18] sm:$0xff]
    %v86 = vld [vmem:[%s2] sm:$0xff]
    %vm87 = vcmask 64512
    %v89 = vsel %vm87, %v82, 0
    %v92 = vsel %vm87, %v83, 0
    %v95 = vsel %vm87, %v84, 0
    %v98 = vsel %vm87, %v85, 0
    %100 = vmatprep.subr.mxu0 0.0
    %101 = vmatpush1.msra.mxu0 %v86
    %102 = vmatprep.subr.mxu0 0.0
    %103 = vmatpush1.msra.mxu0 0.0
    %104 = vmatprep.subr.mxu0 0.0
    %105 = vmatpush1.msra.mxu0 0.0
    %106 = vmatprep.subr.mxu0 0.0
    %107 = vmatpush1.msra.mxu0 0.0
    %108 = vmatprep.subr.mxu0 0.0
    %109 = vmatpush1.msra.mxu0 0.0
    %110 = vmatprep.subr.mxu0 0.0
    %111 = vmatpush1.msra.mxu0 0.0
    %112 = vmatprep.subr.mxu0 0.0
    %113 = vmatpush1.msra.mxu0 0.0
    %114 = vmatprep.subr.mxu0 0.0
    %115 = vmatpush1.msra.mxu0 0.0
    %116 = vmatprep.subr.mxu0 0.0
    %117 = vmatpush1.msra.mxu0 0.0
    %118 = vmatprep.subr.mxu0 0.0
    %119 = vmatpush1.msra.mxu0 0.0
    %120 = vmatprep.subr.mxu0 0.0
    %121 = vmatpush1.msra.mxu0 0.0
    %122 = vmatprep.subr.mxu0 0.0
    %123 = vmatpush1.msra.mxu0 0.0
    %124 = vmatprep.subr.mxu0 0.0
    %125 = vmatpush1.msra.mxu0 0.0
    %126 = vmatprep.subr.mxu0 0.0
    %127 = vmatpush1.msra.mxu0 0.0
    %128 = vmatprep.subr.mxu0 0.0
    %129 = vmatpush1.msra.mxu0 0.0
    %130 = vmatprep.subr.mxu0 0.0
    %131 = vmatpush1.msra.mxu0 0.0
    %132 = vmatprep.subr.mxu0 0.0
    %133 = vmatpush1.msra.mxu0 0.0
    %134 = vmatprep.subr.mxu0 0.0
    %135 = vmatpush1.msra.mxu0 0.0
    %136 = vmatprep.subr.mxu0 0.0
    %137 = vmatpush1.msra.mxu0 0.0
    %138 = vmatprep.subr.mxu0 0.0
    %139 = vmatpush1.msra.mxu0 0.0
    %140 = vmatprep.subr.mxu0 0.0
    %141 = vmatpush1.msra.mxu0 0.0
    %142 = vmatprep.subr.mxu0 0.0
    %143 = vmatpush1.msra.mxu0 0.0
    %144 = vmatprep.subr.mxu0 0.0
    %145 = vmatpush1.msra.mxu0 0.0
    %146 = vmatprep.subr.mxu0 0.0
    %147 = vmatpush1.msra.mxu0 0.0
    %148 = vmatprep.subr.mxu0 0.0
    %149 = vmatpush1.msra.mxu0 0.0
    %150 = vmatprep.subr.mxu0 0.0
    %151 = vmatpush1.msra.mxu0 0.0
    %152 = vmatprep.subr.mxu0 0.0
    %153 = vmatpush1.msra.mxu0 0.0
    %154 = vmatprep.subr.mxu0 0.0
    %155 = vmatpush1.msra.mxu0 0.0
    %156 = vmatprep.subr.mxu0 0.0
    %157 = vmatpush1.msra.mxu0 0.0
    %158 = vmatprep.subr.mxu0 0.0
    %159 = vmatpush1.msra.mxu0 0.0
    %160 = vmatprep.subr.mxu0 0.0
    %161 = vmatpush1.msra.mxu0 0.0
    %162 = vmatprep.subr.mxu0 0.0
    %163 = vmatpush1.msra.mxu0 0.0
    %164 = vmatprep.mubr.f32.mxu0 0.0
    %165 = vmatmul.mubr.f32.gmra.mrb[0].mxu0 %v89
    %v166 = vpop.f32.mrb[0].mxu0
    %v167 = vadd.f32 0.0, %v166
    %v168 = vpop.f32.mrb[0].mxu0
    %169 = vmatprep.mubr.f32.mxu0 0.0
    %170 = vmatmul.mubr.f32.gmra.mrb[0].mxu0 %v92
    %v171 = vpop.f32.mrb[0].mxu0
    %v172 = vadd.f32 0.0, %v171
    %v173 = vpop.f32.mrb[0].mxu0
    %174 = vmatprep.mubr.f32.mxu0 0.0
    %175 = vmatmul.mubr.f32.gmra.mrb[0].mxu0 %v95
    %v176 = vpop.f32.mrb[0].mxu0
    %v177 = vadd.f32 0.0, %v176
    %v178 = vpop.f32.mrb[0].mxu0
    %179 = vmatprep.mubr.f32.mxu0 0.0
    %180 = vmatmul.mubr.f32.gmra.mrb[0].mxu0 %v98
    %v181 = vpop.f32.mrb[0].mxu0
    %v182 = vadd.f32 0.0, %v181
    %v183 = vpop.f32.mrb[0].mxu0
    %184 = vdwg.mxu0
    %s185 = scalar_lea.vmem %s2, 8
    %v186 = vld [vmem:[%s185] sm:$0xff]
    %187 = vmatprep.subr.mxu0 0.0
    %188 = vmatpush1.msra.mxu0 %v186
    %189 = vmatprep.subr.mxu0 0.0
    %190 = vmatpush1.msra.mxu0 0.0
    %191 = vmatprep.subr.mxu0 0.0
    %192 = vmatpush1.msra.mxu0 0.0
    %193 = vmatprep.subr.mxu0 0.0
    %194 = vmatpush1.msra.mxu0 0.0
    %195 = vmatprep.subr.mxu0 0.0
    %196 = vmatpush1.msra.mxu0 0.0
    %197 = vmatprep.subr.mxu0 0.0
    %198 = vmatpush1.msra.mxu0 0.0
    %199 = vmatprep.subr.mxu0 0.0
    %200 = vmatpush1.msra.mxu0 0.0
    %201 = vmatprep.subr.mxu0 0.0
    %202 = vmatpush1.msra.mxu0 0.0
    %203 = vmatprep.subr.mxu0 0.0
    %204 = vmatpush1.msra.mxu0 0.0
    %205 = vmatprep.subr.mxu0 0.0
    %206 = vmatpush1.msra.mxu0 0.0
    %207 = vmatprep.subr.mxu0 0.0
    %208 = vmatpush1.msra.mxu0 0.0
    %209 = vmatprep.subr.mxu0 0.0
    %210 = vmatpush1.msra.mxu0 0.0
    %211 = vmatprep.subr.mxu0 0.0
    %212 = vmatpush1.msra.mxu0 0.0
    %213 = vmatprep.subr.mxu0 0.0
    %214 = vmatpush1.msra.mxu0 0.0
    %215 = vmatprep.subr.mxu0 0.0
    %216 = vmatpush1.msra.mxu0 0.0
    %217 = vmatprep.subr.mxu0 0.0
    %218 = vmatpush1.msra.mxu0 0.0
    %219 = vmatprep.subr.mxu0 0.0
    %220 = vmatpush1.msra.mxu0 0.0
    %221 = vmatprep.subr.mxu0 0.0
    %222 = vmatpush1.msra.mxu0 0.0
    %223 = vmatprep.subr.mxu0 0.0
    %224 = vmatpush1.msra.mxu0 0.0
    %225 = vmatprep.subr.mxu0 0.0
    %226 = vmatpush1.msra.mxu0 0.0
    %227 = vmatprep.subr.mxu0 0.0
    %228 = vmatpush1.msra.mxu0 0.0
    %229 = vmatprep.subr.mxu0 0.0
    %230 = vmatpush1.msra.mxu0 0.0
    %231 = vmatprep.subr.mxu0 0.0
    %232 = vmatpush1.msra.mxu0 0.0
    %233 = vmatprep.subr.mxu0 0.0
    %234 = vmatpush1.msra.mxu0 0.0
    %235 = vmatprep.subr.mxu0 0.0
    %236 = vmatpush1.msra.mxu0 0.0
    %237 = vmatprep.subr.mxu0 0.0
    %238 = vmatpush1.msra.mxu0 0.0
    %239 = vmatprep.subr.mxu0 0.0
    %240 = vmatpush1.msra.mxu0 0.0
    %241 = vmatprep.subr.mxu0 0.0
    %242 = vmatpush1.msra.mxu0 0.0
    %243 = vmatprep.subr.mxu0 0.0
    %244 = vmatpush1.msra.mxu0 0.0
    %245 = vmatprep.subr.mxu0 0.0
    %246 = vmatpush1.msra.mxu0 0.0
    %247 = vmatprep.subr.mxu0 0.0
    %248 = vmatpush1.msra.mxu0 0.0
    %249 = vmatprep.subr.mxu0 0.0
    %250 = vmatpush1.msra.mxu0 0.0
    %251 = vmatprep.mubr.f32.mxu0 0.0
    %252 = vmatmul.mubr.f32.gmra.mrb[0].mxu0 %v89
    %v253 = vpop.f32.mrb[0].mxu0
    %v254 = vadd.f32 0.0, %v253
    %v255 = vpop.f32.mrb[0].mxu0
    %256 = vmatprep.mubr.f32.mxu0 0.0
    %257 = vmatmul.mubr.f32.gmra.mrb[0].mxu0 %v92
    %v258 = vpop.f32.mrb[0].mxu0
    %v259 = vadd.f32 0.0, %v258
    %v260 = vpop.f32.mrb[0].mxu0
    %261 = vmatprep.mubr.f32.mxu0 0.0
    %262 = vmatmul.mubr.f32.gmra.mrb[0].mxu0 %v95
    %v263 = vpop.f32.mrb[0].mxu0
    %v264 = vadd.f32 0.0, %v263
    %v265 = vpop.f32.mrb[0].mxu0
    %266 = vmatprep.mubr.f32.mxu0 0.0
    %267 = vmatmul.mubr.f32.gmra.mrb[0].mxu0 %v98
    %v268 = vpop.f32.mrb[0].mxu0
    %v269 = vadd.f32 0.0, %v268
    %v270 = vpop.f32.mrb[0].mxu0
    %271 = vdwg.mxu0
    %s272 = scalar_lea.vmem %s2, 16
    %v273 = vld [vmem:[%s272] sm:$0xff]
    %274 = vmatprep.subr.mxu0 0.0
    %275 = vmatpush1.msra.mxu0 %v273
    %276 = vmatprep.subr.mxu0 0.0
    %277 = vmatpush1.msra.mxu0 0.0
    %278 = vmatprep.subr.mxu0 0.0
    %279 = vmatpush1.msra.mxu0 0.0
    %280 = vmatprep.subr.mxu0 0.0
    %281 = vmatpush1.msra.mxu0 0.0
    %282 = vmatprep.subr.mxu0 0.0
    %283 = vmatpush1.msra.mxu0 0.0
    %284 = vmatprep.subr.mxu0 0.0
    %285 = vmatpush1.msra.mxu0 0.0
    %286 = vmatprep.subr.mxu0 0.0
    %287 = vmatpush1.msra.mxu0 0.0
    %288 = vmatprep.subr.mxu0 0.0
    %289 = vmatpush1.msra.mxu0 0.0
    %290 = vmatprep.subr.mxu0 0.0
    %291 = vmatpush1.msra.mxu0 0.0
    %292 = vmatprep.subr.mxu0 0.0
    %293 = vmatpush1.msra.mxu0 0.0
    %294 = vmatprep.subr.mxu0 0.0
    %295 = vmatpush1.msra.mxu0 0.0
    %296 = vmatprep.subr.mxu0 0.0
    %297 = vmatpush1.msra.mxu0 0.0
    %298 = vmatprep.subr.mxu0 0.0
    %299 = vmatpush1.msra.mxu0 0.0
    %300 = vmatprep.subr.mxu0 0.0
    %301 = vmatpush1.msra.mxu0 0.0
    %302 = vmatprep.subr.mxu0 0.0
    %303 = vmatpush1.msra.mxu0 0.0
    %304 = vmatprep.subr.mxu0 0.0
    %305 = vmatpush1.msra.mxu0 0.0
    %306 = vmatprep.subr.mxu0 0.0
    %307 = vmatpush1.msra.mxu0 0.0
    %308 = vmatprep.subr.mxu0 0.0
    %309 = vmatpush1.msra.mxu0 0.0
    %310 = vmatprep.subr.mxu0 0.0
    %311 = vmatpush1.msra.mxu0 0.0
    %312 = vmatprep.subr.mxu0 0.0
    %313 = vmatpush1.msra.mxu0 0.0
    %314 = vmatprep.subr.mxu0 0.0
    %315 = vmatpush1.msra.mxu0 0.0
    %316 = vmatprep.subr.mxu0 0.0
    %317 = vmatpush1.msra.mxu0 0.0
    %318 = vmatprep.subr.mxu0 0.0
    %319 = vmatpush1.msra.mxu0 0.0
    %320 = vmatprep.subr.mxu0 0.0
    %321 = vmatpush1.msra.mxu0 0.0
    %322 = vmatprep.subr.mxu0 0.0
    %323 = vmatpush1.msra.mxu0 0.0
    %324 = vmatprep.subr.mxu0 0.0
    %325 = vmatpush1.msra.mxu0 0.0
    %326 = vmatprep.subr.mxu0 0.0
    %327 = vmatpush1.msra.mxu0 0.0
    %328 = vmatprep.subr.mxu0 0.0
    %329 = vmatpush1.msra.mxu0 0.0
    %330 = vmatprep.subr.mxu0 0.0
    %331 = vmatpush1.msra.mxu0 0.0
    %332 = vmatprep.subr.mxu0 0.0
    %333 = vmatpush1.msra.mxu0 0.0
    %334 = vmatprep.subr.mxu0 0.0
    %335 = vmatpush1.msra.mxu0 0.0
    %336 = vmatprep.subr.mxu0 0.0
    %337 = vmatpush1.msra.mxu0 0.0
    %338 = vmatprep.mubr.f32.mxu0 0.0
    %339 = vmatmul.mubr.f32.gmra.mrb[0].mxu0 %v89
    %v340 = vpop.f32.mrb[0].mxu0
    %v341 = vadd.f32 0.0, %v340
    %v342 = vpop.f32.mrb[0].mxu0
    %343 = vmatprep.mubr.f32.mxu0 0.0
    %344 = vmatmul.mubr.f32.gmra.mrb[0].mxu0 %v92
    %v345 = vpop.f32.mrb[0].mxu0
    %v346 = vadd.f32 0.0, %v345
    %v347 = vpop.f32.mrb[0].mxu0
    %348 = vmatprep.mubr.f32.mxu0 0.0
    %349 = vmatmul.mubr.f32.gmra.mrb[0].mxu0 %v95
    %v350 = vpop.f32.mrb[0].mxu0
    %v351 = vadd.f32 0.0, %v350
    %v352 = vpop.f32.mrb[0].mxu0
    %353 = vmatprep.mubr.f32.mxu0 0.0
    %354 = vmatmul.mubr.f32.gmra.mrb[0].mxu0 %v98
    %v355 = vpop.f32.mrb[0].mxu0
    %v356 = vadd.f32 0.0, %v355
    %v357 = vpop.f32.mrb[0].mxu0
    %358 = vdwg.mxu0
    %v359 = vld [vmem:[#allocation5] sm:$0xff]
    %360 = vmatprep.subr.mxu0 0.0
    %361 = vmatpush1.msra.mxu0 %v359
    %362 = vmatprep.subr.mxu0 0.0
    %363 = vmatpush1.msra.mxu0 0.0
    %364 = vmatprep.subr.mxu0 0.0
    %365 = vmatpush1.msra.mxu0 0.0
    %366 = vmatprep.subr.mxu0 0.0
    %367 = vmatpush1.msra.mxu0 0.0
    %368 = vmatprep.subr.mxu0 0.0
    %369 = vmatpush1.msra.mxu0 0.0
    %370 = vmatprep.subr.mxu0 0.0
    %371 = vmatpush1.msra.mxu0 0.0
    %372 = vmatprep.subr.mxu0 0.0
    %373 = vmatpush1.msra.mxu0 0.0
    %374 = vmatprep.subr.mxu0 0.0
    %375 = vmatpush1.msra.mxu0 0.0
    %376 = vmatprep.subr.mxu0 0.0
    %377 = vmatpush1.msra.mxu0 0.0
    %378 = vmatprep.subr.mxu0 0.0
    %379 = vmatpush1.msra.mxu0 0.0
    %380 = vmatprep.subr.mxu0 0.0
    %381 = vmatpush1.msra.mxu0 0.0
    %382 = vmatprep.subr.mxu0 0.0
    %383 = vmatpush1.msra.mxu0 0.0
    %384 = vmatprep.subr.mxu0 0.0
    %385 = vmatpush1.msra.mxu0 0.0
    %386 = vmatprep.subr.mxu0 0.0
    %387 = vmatpush1.msra.mxu0 0.0
    %388 = vmatprep.subr.mxu0 0.0
    %389 = vmatpush1.msra.mxu0 0.0
    %390 = vmatprep.subr.mxu0 0.0
    %391 = vmatpush1.msra.mxu0 0.0
    %392 = vmatprep.subr.mxu0 0.0
    %393 = vmatpush1.msra.mxu0 0.0
    %394 = vmatprep.subr.mxu0 0.0
    %395 = vmatpush1.msra.mxu0 0.0
    %396 = vmatprep.subr.mxu0 0.0
    %397 = vmatpush1.msra.mxu0 0.0
    %398 = vmatprep.subr.mxu0 0.0
    %399 = vmatpush1.msra.mxu0 0.0
    %400 = vmatprep.subr.mxu0 0.0
    %401 = vmatpush1.msra.mxu0 0.0
    %402 = vmatprep.subr.mxu0 0.0
    %403 = vmatpush1.msra.mxu0 0.0
    %404 = vmatprep.subr.mxu0 0.0
    %405 = vmatpush1.msra.mxu0 0.0
    %406 = vmatprep.subr.mxu0 0.0
    %407 = vmatpush1.msra.mxu0 0.0
    %408 = vmatprep.subr.mxu0 0.0
    %409 = vmatpush1.msra.mxu0 0.0
    %410 = vmatprep.subr.mxu0 0.0
    %411 = vmatpush1.msra.mxu0 0.0
    %412 = vmatprep.subr.mxu0 0.0
    %413 = vmatpush1.msra.mxu0 0.0
    %414 = vmatprep.subr.mxu0 0.0
    %415 = vmatpush1.msra.mxu0 0.0
    %416 = vmatprep.subr.mxu0 0.0
    %417 = vmatpush1.msra.mxu0 0.0
    %418 = vmatprep.subr.mxu0 0.0
    %419 = vmatpush1.msra.mxu0 0.0
    %420 = vmatprep.subr.mxu0 0.0
    %421 = vmatpush1.msra.mxu0 0.0
    %422 = vmatprep.subr.mxu0 0.0
    %423 = vmatpush1.msra.mxu0 0.0
    %424 = vmatprep.mubr.f32.mxu0 0.0
    %425 = vmatmul.mubr.f32.gmra.mrb[0].mxu0 %v89
    %v426 = vpop.f32.mrb[0].mxu0
    %v427 = vadd.f32 0.0, %v426
    %v428 = vpop.f32.mrb[0].mxu0
    %429 = vmatprep.mubr.f32.mxu0 0.0
    %430 = vmatmul.mubr.f32.gmra.mrb[0].mxu0 %v92
    %v431 = vpop.f32.mrb[0].mxu0
    %v432 = vadd.f32 0.0, %v431
    %v433 = vpop.f32.mrb[0].mxu0
    %434 = vmatprep.mubr.f32.mxu0 0.0
    %435 = vmatmul.mubr.f32.gmra.mrb[0].mxu0 %v95
    %v436 = vpop.f32.mrb[0].mxu0
    %v437 = vadd.f32 0.0, %v436
    %v438 = vpop.f32.mrb[0].mxu0
    %439 = vmatprep.mubr.f32.mxu0 0.0
    %440 = vmatmul.mubr.f32.gmra.mrb[0].mxu0 %v98
    %v441 = vpop.f32.mrb[0].mxu0
    %v442 = vadd.f32 0.0, %v441
    %v443 = vpop.f32.mrb[0].mxu0
    %444 = vdwg.mxu0
    %vm445 = vcmask 785408
    %v447 = vsel %vm445, %v78, 0
    %v450 = vsel %vm445, %v79, 0
    %v453 = vsel %vm445, %v80, 0
    %v456 = vsel %vm445, %v81, 0
    %458 = vmatprep.subr.mxu0 0.0
    %459 = vmatpush1.msra.mxu0 %v167
    %460 = vmatprep.subr.mxu0 0.0
    %461 = vmatpush1.msra.mxu0 %v172
    %462 = vmatprep.subr.mxu0 0.0
    %463 = vmatpush1.msra.mxu0 %v177
    %464 = vmatprep.subr.mxu0 0.0
    %465 = vmatpush1.msra.mxu0 %v182
    %466 = vmatprep.subr.mxu0 0.0
    %467 = vmatpush1.msra.mxu0 %v254
    %468 = vmatprep.subr.mxu0 0.0
    %469 = vmatpush1.msra.mxu0 %v259
    %470 = vmatprep.subr.mxu0 0.0
    %471 = vmatpush1.msra.mxu0 %v264
    %472 = vmatprep.subr.mxu0 0.0
    %473 = vmatpush1.msra.mxu0 %v269
    %474 = vmatprep.subr.mxu0 0.0
    %475 = vmatpush1.msra.mxu0 %v341
    %476 = vmatprep.subr.mxu0 0.0
    %477 = vmatpush1.msra.mxu0 %v346
    %478 = vmatprep.subr.mxu0 0.0
    %479 = vmatpush1.msra.mxu0 %v351
    %480 = vmatprep.subr.mxu0 0.0
    %481 = vmatpush1.msra.mxu0 %v356
    %482 = vmatprep.subr.mxu0 0.0
    %483 = vmatpush1.msra.mxu0 0.0
    %484 = vmatprep.subr.mxu0 0.0
    %485 = vmatpush1.msra.mxu0 0.0
    %486 = vmatprep.subr.mxu0 0.0
    %487 = vmatpush1.msra.mxu0 0.0
    %488 = vmatprep.subr.mxu0 0.0
    %489 = vmatpush1.msra.mxu0 0.0
    %490 = vmatprep.subr.mxu0 0.0
    %491 = vmatpush1.msra.mxu0 0.0
    %492 = vmatprep.subr.mxu0 0.0
    %493 = vmatpush1.msra.mxu0 0.0
    %494 = vmatprep.subr.mxu0 0.0
    %495 = vmatpush1.msra.mxu0 0.0
    %496 = vmatprep.subr.mxu0 0.0
    %497 = vmatpush1.msra.mxu0 0.0
    %498 = vmatprep.subr.mxu0 0.0
    %499 = vmatpush1.msra.mxu0 0.0
    %500 = vmatprep.subr.mxu0 0.0
    %501 = vmatpush1.msra.mxu0 0.0
    %502 = vmatprep.subr.mxu0 0.0
    %503 = vmatpush1.msra.mxu0 0.0
    %504 = vmatprep.subr.mxu0 0.0
    %505 = vmatpush1.msra.mxu0 0.0
    %506 = vmatprep.subr.mxu0 0.0
    %507 = vmatpush1.msra.mxu0 0.0
    %508 = vmatprep.subr.mxu0 0.0
    %509 = vmatpush1.msra.mxu0 0.0
    %510 = vmatprep.subr.mxu0 0.0
    %511 = vmatpush1.msra.mxu0 0.0
    %512 = vmatprep.subr.mxu0 0.0
    %513 = vmatpush1.msra.mxu0 0.0
    %514 = vmatprep.subr.mxu0 0.0
    %515 = vmatpush1.msra.mxu0 0.0
    %516 = vmatprep.subr.mxu0 0.0
    %517 = vmatpush1.msra.mxu0 0.0
    %518 = vmatprep.subr.mxu0 0.0
    %519 = vmatpush1.msra.mxu0 0.0
    %520 = vmatprep.subr.mxu0 0.0
    %521 = vmatpush1.msra.mxu0 0.0
    %522 = vmatprep.mubr.f32.mxu0 0.0
    %523 = vmatmul.mubr.f32.gmra.mrb[0].mxu0 %v447
    %v524 = vpop.f32.mrb[0].mxu0
    %v525 = vadd.f32 %v427, %v524
    %v526 = vpop.f32.mrb[0].mxu0
    %527 = vmatprep.mubr.f32.mxu0 0.0
    %528 = vmatmul.mubr.f32.gmra.mrb[0].mxu0 %v450
    %v529 = vpop.f32.mrb[0].mxu0
    %v530 = vadd.f32 %v432, %v529
    %v531 = vpop.f32.mrb[0].mxu0
    %532 = vmatprep.mubr.f32.mxu0 0.0
    %533 = vmatmul.mubr.f32.gmra.mrb[0].mxu0 %v453
    %v534 = vpop.f32.mrb[0].mxu0
    %v535 = vadd.f32 %v437, %v534
    %v536 = vpop.f32.mrb[0].mxu0
    %537 = vmatprep.mubr.f32.mxu0 0.0
    %538 = vmatmul.mubr.f32.gmra.mrb[0].mxu0 %v456
    %v539 = vpop.f32.mrb[0].mxu0
    %v540 = vadd.f32 %v442, %v539
    %v541 = vpop.f32.mrb[0].mxu0
    %542 = vdwg.mxu0
    %v543 = vld [vmem:[%s4] sm:$0x1]
    %v545 = vlaneseq
    %v546 = vshrl.u32 %v545, 7
    %v547 = vsub.s32 0, %v546
    %v548 = vrot.slane %v543, %v547
    %v550 = vadd.f32 %v525, %v548
    %v551 = vadd.f32 %v530, %v548
    %v552 = vadd.f32 %v535, %v548
    %v553 = vadd.f32 %v540, %v548
    %v554 = vmax.f32 %v550, 0.0
    %v555 = vmax.f32 %v551, 0.0
    %v556 = vmax.f32 %v552, 0.0
    %v557 = vmax.f32 %v553, 0.0
    %v558 = vld [vmem:[%s5] sm:$0xff]
    %v559 = vld [vmem:[%s5 + $0x8] sm:$0xff]
    %vm560 = vcmask 130048
    %v562 = vsel %vm560, %v554, 0
    %v565 = vsel %vm560, %v555, 0
    %v568 = vsel %vm560, %v556, 0
    %v571 = vsel %vm560, %v557, 0
    %573 = vmatprep.subr.mxu0 0.0
    %574 = vmatpush1.msra.mxu0 %v558
    %575 = vmatprep.subr.mxu0 0.0
    %576 = vmatpush1.msra.mxu0 %v559
    %577 = vmatprep.subr.mxu0 0.0
    %578 = vmatpush1.msra.mxu0 0.0
    %579 = vmatprep.subr.mxu0 0.0
    %580 = vmatpush1.msra.mxu0 0.0
    %581 = vmatprep.subr.mxu0 0.0
    %582 = vmatpush1.msra.mxu0 0.0
    %583 = vmatprep.subr.mxu0 0.0
    %584 = vmatpush1.msra.mxu0 0.0
    %585 = vmatprep.subr.mxu0 0.0
    %586 = vmatpush1.msra.mxu0 0.0
    %587 = vmatprep.subr.mxu0 0.0
    %588 = vmatpush1.msra.mxu0 0.0
    %589 = vmatprep.subr.mxu0 0.0
    %590 = vmatpush1.msra.mxu0 0.0
    %591 = vmatprep.subr.mxu0 0.0
    %592 = vmatpush1.msra.mxu0 0.0
    %593 = vmatprep.subr.mxu0 0.0
    %594 = vmatpush1.msra.mxu0 0.0
    %595 = vmatprep.subr.mxu0 0.0
    %596 = vmatpush1.msra.mxu0 0.0
    %597 = vmatprep.subr.mxu0 0.0
    %598 = vmatpush1.msra.mxu0 0.0
    %599 = vmatprep.subr.mxu0 0.0
    %600 = vmatpush1.msra.mxu0 0.0
    %601 = vmatprep.subr.mxu0 0.0
    %602 = vmatpush1.msra.mxu0 0.0
    %603 = vmatprep.subr.mxu0 0.0
    %604 = vmatpush1.msra.mxu0 0.0
    %605 = vmatprep.subr.mxu0 0.0
    %606 = vmatpush1.msra.mxu0 0.0
    %607 = vmatprep.subr.mxu0 0.0
    %608 = vmatpush1.msra.mxu0 0.0
    %609 = vmatprep.subr.mxu0 0.0
    %610 = vmatpush1.msra.mxu0 0.0
    %611 = vmatprep.subr.mxu0 0.0
    %612 = vmatpush1.msra.mxu0 0.0
    %613 = vmatprep.subr.mxu0 0.0
    %614 = vmatpush1.msra.mxu0 0.0
    %615 = vmatprep.subr.mxu0 0.0
    %616 = vmatpush1.msra.mxu0 0.0
    %617 = vmatprep.subr.mxu0 0.0
    %618 = vmatpush1.msra.mxu0 0.0
    %619 = vmatprep.subr.mxu0 0.0
    %620 = vmatpush1.msra.mxu0 0.0
    %621 = vmatprep.subr.mxu0 0.0
    %622 = vmatpush1.msra.mxu0 0.0
    %623 = vmatprep.subr.mxu0 0.0
    %624 = vmatpush1.msra.mxu0 0.0
    %625 = vmatprep.subr.mxu0 0.0
    %626 = vmatpush1.msra.mxu0 0.0
    %627 = vmatprep.subr.mxu0 0.0
    %628 = vmatpush1.msra.mxu0 0.0
    %629 = vmatprep.subr.mxu0 0.0
    %630 = vmatpush1.msra.mxu0 0.0
    %631 = vmatprep.subr.mxu0 0.0
    %632 = vmatpush1.msra.mxu0 0.0
    %633 = vmatprep.subr.mxu0 0.0
    %634 = vmatpush1.msra.mxu0 0.0
    %635 = vmatprep.subr.mxu0 0.0
    %636 = vmatpush1.msra.mxu0 0.0
    %637 = vmatprep.mubr.f32.mxu0 0.0
    %638 = vmatmul.mubr.f32.gmra.mrb[0].mxu0 %v562
    %v639 = vpop.f32.mrb[0].mxu0
    %v640 = vadd.f32 0.0, %v639
    %v641 = vpop.f32.mrb[0].mxu0
    %642 = vmatprep.mubr.f32.mxu0 0.0
    %643 = vmatmul.mubr.f32.gmra.mrb[0].mxu0 %v565
    %v644 = vpop.f32.mrb[0].mxu0
    %v645 = vadd.f32 0.0, %v644
    %v646 = vpop.f32.mrb[0].mxu0
    %647 = vmatprep.mubr.f32.mxu0 0.0
    %648 = vmatmul.mubr.f32.gmra.mrb[0].mxu0 %v568
    %v649 = vpop.f32.mrb[0].mxu0
    %v650 = vadd.f32 0.0, %v649
    %v651 = vpop.f32.mrb[0].mxu0
    %652 = vmatprep.mubr.f32.mxu0 0.0
    %653 = vmatmul.mubr.f32.gmra.mrb[0].mxu0 %v571
    %v654 = vpop.f32.mrb[0].mxu0
    %v655 = vadd.f32 0.0, %v654
    %v656 = vpop.f32.mrb[0].mxu0
    %657 = vdwg.mxu0
    %s658 = scalar_lea.vmem %s5, 16
    %v659 = vld [vmem:[%s658] sm:$0xff]
    %v660 = vld [vmem:[%s658 + $0x8] sm:$0xff]
    %661 = vmatprep.subr.mxu0 0.0
    %662 = vmatpush1.msra.mxu0 %v659
    %663 = vmatprep.subr.mxu0 0.0
    %664 = vmatpush1.msra.mxu0 %v660
    %665 = vmatprep.subr.mxu0 0.0
    %666 = vmatpush1.msra.mxu0 0.0
    %667 = vmatprep.subr.mxu0 0.0
    %668 = vmatpush1.msra.mxu0 0.0
    %669 = vmatprep.subr.mxu0 0.0
    %670 = vmatpush1.msra.mxu0 0.0
    %671 = vmatprep.subr.mxu0 0.0
    %672 = vmatpush1.msra.mxu0 0.0
    %673 = vmatprep.subr.mxu0 0.0
    %674 = vmatpush1.msra.mxu0 0.0
    %675 = vmatprep.subr.mxu0 0.0
    %676 = vmatpush1.msra.mxu0 0.0
    %677 = vmatprep.subr.mxu0 0.0
    %678 = vmatpush1.msra.mxu0 0.0
    %679 = vmatprep.subr.mxu0 0.0
    %680 = vmatpush1.msra.mxu0 0.0
    %681 = vmatprep.subr.mxu0 0.0
    %682 = vmatpush1.msra.mxu0 0.0
    %683 = vmatprep.subr.mxu0 0.0
    %684 = vmatpush1.msra.mxu0 0.0
    %685 = vmatprep.subr.mxu0 0.0
    %686 = vmatpush1.msra.mxu0 0.0
    %687 = vmatprep.subr.mxu0 0.0
    %688 = vmatpush1.msra.mxu0 0.0
    %689 = vmatprep.subr.mxu0 0.0
    %690 = vmatpush1.msra.mxu0 0.0
    %691 = vmatprep.subr.mxu0 0.0
    %692 = vmatpush1.msra.mxu0 0.0
    %693 = vmatprep.subr.mxu0 0.0
    %694 = vmatpush1.msra.mxu0 0.0
    %695 = vmatprep.subr.mxu0 0.0
    %696 = vmatpush1.msra.mxu0 0.0
    %697 = vmatprep.subr.mxu0 0.0
    %698 = vmatpush1.msra.mxu0 0.0
    %699 = vmatprep.subr.mxu0 0.0
    %700 = vmatpush1.msra.mxu0 0.0
    %701 = vmatprep.subr.mxu0 0.0
    %702 = vmatpush1.msra.mxu0 0.0
    %703 = vmatprep.subr.mxu0 0.0
    %704 = vmatpush1.msra.mxu0 0.0
    %705 = vmatprep.subr.mxu0 0.0
    %706 = vmatpush1.msra.mxu0 0.0
    %707 = vmatprep.subr.mxu0 0.0
    %708 = vmatpush1.msra.mxu0 0.0
    %709 = vmatprep.subr.mxu0 0.0
    %710 = vmatpush1.msra.mxu0 0.0
    %711 = vmatprep.subr.mxu0 0.0
    %712 = vmatpush1.msra.mxu0 0.0
    %713 = vmatprep.subr.mxu0 0.0
    %714 = vmatpush1.msra.mxu0 0.0
    %715 = vmatprep.subr.mxu0 0.0
    %716 = vmatpush1.msra.mxu0 0.0
    %717 = vmatprep.subr.mxu0 0.0
    %718 = vmatpush1.msra.mxu0 0.0
    %719 = vmatprep.subr.mxu0 0.0
    %720 = vmatpush1.msra.mxu0 0.0
    %721 = vmatprep.subr.mxu0 0.0
    %722 = vmatpush1.msra.mxu0 0.0
    %723 = vmatprep.subr.mxu0 0.0
    %724 = vmatpush1.msra.mxu0 0.0
    %725 = vmatprep.mubr.f32.mxu0 0.0
    %726 = vmatmul.mubr.f32.gmra.mrb[0].mxu0 %v562
    %v727 = vpop.f32.mrb[0].mxu0
    %v728 = vadd.f32 0.0, %v727
    %v729 = vpop.f32.mrb[0].mxu0
    %730 = vmatprep.mubr.f32.mxu0 0.0
    %731 = vmatmul.mubr.f32.gmra.mrb[0].mxu0 %v565
    %v732 = vpop.f32.mrb[0].mxu0
    %v733 = vadd.f32 0.0, %v732
    %v734 = vpop.f32.mrb[0].mxu0
    %735 = vmatprep.mubr.f32.mxu0 0.0
    %736 = vmatmul.mubr.f32.gmra.mrb[0].mxu0 %v568
    %v737 = vpop.f32.mrb[0].mxu0
    %v738 = vadd.f32 0.0, %v737
    %v739 = vpop.f32.mrb[0].mxu0
    %740 = vmatprep.mubr.f32.mxu0 0.0
    %741 = vmatmul.mubr.f32.gmra.mrb[0].mxu0 %v571
    %v742 = vpop.f32.mrb[0].mxu0
    %v743 = vadd.f32 0.0, %v742
    %v744 = vpop.f32.mrb[0].mxu0
    %745 = vdwg.mxu0
    %s746 = scalar_lea.vmem %s5, 32
    %v747 = vld [vmem:[%s746] sm:$0xff]
    %v748 = vld [vmem:[%s746 + $0x8] sm:$0xff]
    %749 = vmatprep.subr.mxu0 0.0
    %750 = vmatpush1.msra.mxu0 %v747
    %751 = vmatprep.subr.mxu0 0.0
    %752 = vmatpush1.msra.mxu0 %v748
    %753 = vmatprep.subr.mxu0 0.0
    %754 = vmatpush1.msra.mxu0 0.0
    %755 = vmatprep.subr.mxu0 0.0
    %756 = vmatpush1.msra.mxu0 0.0
    %757 = vmatprep.subr.mxu0 0.0
    %758 = vmatpush1.msra.mxu0 0.0
    %759 = vmatprep.subr.mxu0 0.0
    %760 = vmatpush1.msra.mxu0 0.0
    %761 = vmatprep.subr.mxu0 0.0
    %762 = vmatpush1.msra.mxu0 0.0
    %763 = vmatprep.subr.mxu0 0.0
    %764 = vmatpush1.msra.mxu0 0.0
    %765 = vmatprep.subr.mxu0 0.0
    %766 = vmatpush1.msra.mxu0 0.0
    %767 = vmatprep.subr.mxu0 0.0
    %768 = vmatpush1.msra.mxu0 0.0
    %769 = vmatprep.subr.mxu0 0.0
    %770 = vmatpush1.msra.mxu0 0.0
    %771 = vmatprep.subr.mxu0 0.0
    %772 = vmatpush1.msra.mxu0 0.0
    %773 = vmatprep.subr.mxu0 0.0
    %774 = vmatpush1.msra.mxu0 0.0
    %775 = vmatprep.subr.mxu0 0.0
    %776 = vmatpush1.msra.mxu0 0.0
    %777 = vmatprep.subr.mxu0 0.0
    %778 = vmatpush1.msra.mxu0 0.0
    %779 = vmatprep.subr.mxu0 0.0
    %780 = vmatpush1.msra.mxu0 0.0
    %781 = vmatprep.subr.mxu0 0.0
    %782 = vmatpush1.msra.mxu0 0.0
    %783 = vmatprep.subr.mxu0 0.0
    %784 = vmatpush1.msra.mxu0 0.0
    %785 = vmatprep.subr.mxu0 0.0
    %786 = vmatpush1.msra.mxu0 0.0
    %787 = vmatprep.subr.mxu0 0.0
    %788 = vmatpush1.msra.mxu0 0.0
    %789 = vmatprep.subr.mxu0 0.0
    %790 = vmatpush1.msra.mxu0 0.0
    %791 = vmatprep.subr.mxu0 0.0
    %792 = vmatpush1.msra.mxu0 0.0
    %793 = vmatprep.subr.mxu0 0.0
    %794 = vmatpush1.msra.mxu0 0.0
    %795 = vmatprep.subr.mxu0 0.0
    %796 = vmatpush1.msra.mxu0 0.0
    %797 = vmatprep.subr.mxu0 0.0
    %798 = vmatpush1.msra.mxu0 0.0
    %799 = vmatprep.subr.mxu0 0.0
    %800 = vmatpush1.msra.mxu0 0.0
    %801 = vmatprep.subr.mxu0 0.0
    %802 = vmatpush1.msra.mxu0 0.0
    %803 = vmatprep.subr.mxu0 0.0
    %804 = vmatpush1.msra.mxu0 0.0
    %805 = vmatprep.subr.mxu0 0.0
    %806 = vmatpush1.msra.mxu0 0.0
    %807 = vmatprep.subr.mxu0 0.0
    %808 = vmatpush1.msra.mxu0 0.0
    %809 = vmatprep.subr.mxu0 0.0
    %810 = vmatpush1.msra.mxu0 0.0
    %811 = vmatprep.subr.mxu0 0.0
    %812 = vmatpush1.msra.mxu0 0.0
    %813 = vmatprep.mubr.f32.mxu0 0.0
    %814 = vmatmul.mubr.f32.gmra.mrb[0].mxu0 %v562
    %v815 = vpop.f32.mrb[0].mxu0
    %v816 = vadd.f32 0.0, %v815
    %v817 = vpop.f32.mrb[0].mxu0
    %818 = vmatprep.mubr.f32.mxu0 0.0
    %819 = vmatmul.mubr.f32.gmra.mrb[0].mxu0 %v565
    %v820 = vpop.f32.mrb[0].mxu0
    %v821 = vadd.f32 0.0, %v820
    %v822 = vpop.f32.mrb[0].mxu0
    %823 = vmatprep.mubr.f32.mxu0 0.0
    %824 = vmatmul.mubr.f32.gmra.mrb[0].mxu0 %v568
    %v825 = vpop.f32.mrb[0].mxu0
    %v826 = vadd.f32 0.0, %v825
    %v827 = vpop.f32.mrb[0].mxu0
    %828 = vmatprep.mubr.f32.mxu0 0.0
    %829 = vmatmul.mubr.f32.gmra.mrb[0].mxu0 %v571
    %v830 = vpop.f32.mrb[0].mxu0
    %v831 = vadd.f32 0.0, %v830
    %v832 = vpop.f32.mrb[0].mxu0
    %833 = vdwg.mxu0
    %v834 = vld [vmem:[#allocation7] sm:$0xff]
    %v835 = vld [vmem:[#allocation7 + $0x8] sm:$0xff]
    %836 = vmatprep.subr.mxu0 0.0
    %837 = vmatpush1.msra.mxu0 %v834
    %838 = vmatprep.subr.mxu0 0.0
    %839 = vmatpush1.msra.mxu0 %v835
    %840 = vmatprep.subr.mxu0 0.0
    %841 = vmatpush1.msra.mxu0 0.0
    %842 = vmatprep.subr.mxu0 0.0
    %843 = vmatpush1.msra.mxu0 0.0
    %844 = vmatprep.subr.mxu0 0.0
    %845 = vmatpush1.msra.mxu0 0.0
    %846 = vmatprep.subr.mxu0 0.0
    %847 = vmatpush1.msra.mxu0 0.0
    %848 = vmatprep.subr.mxu0 0.0
    %849 = vmatpush1.msra.mxu0 0.0
    %850 = vmatprep.subr.mxu0 0.0
    %851 = vmatpush1.msra.mxu0 0.0
    %852 = vmatprep.subr.mxu0 0.0
    %853 = vmatpush1.msra.mxu0 0.0
    %854 = vmatprep.subr.mxu0 0.0
    %855 = vmatpush1.msra.mxu0 0.0
    %856 = vmatprep.subr.mxu0 0.0
    %857 = vmatpush1.msra.mxu0 0.0
    %858 = vmatprep.subr.mxu0 0.0
    %859 = vmatpush1.msra.mxu0 0.0
    %860 = vmatprep.subr.mxu0 0.0
    %861 = vmatpush1.msra.mxu0 0.0
    %862 = vmatprep.subr.mxu0 0.0
    %863 = vmatpush1.msra.mxu0 0.0
    %864 = vmatprep.subr.mxu0 0.0
    %865 = vmatpush1.msra.mxu0 0.0
    %866 = vmatprep.subr.mxu0 0.0
    %867 = vmatpush1.msra.mxu0 0.0
    %868 = vmatprep.subr.mxu0 0.0
    %869 = vmatpush1.msra.mxu0 0.0
    %870 = vmatprep.subr.mxu0 0.0
    %871 = vmatpush1.msra.mxu0 0.0
    %872 = vmatprep.subr.mxu0 0.0
    %873 = vmatpush1.msra.mxu0 0.0
    %874 = vmatprep.subr.mxu0 0.0
    %875 = vmatpush1.msra.mxu0 0.0
    %876 = vmatprep.subr.mxu0 0.0
    %877 = vmatpush1.msra.mxu0 0.0
    %878 = vmatprep.subr.mxu0 0.0
    %879 = vmatpush1.msra.mxu0 0.0
    %880 = vmatprep.subr.mxu0 0.0
    %881 = vmatpush1.msra.mxu0 0.0
    %882 = vmatprep.subr.mxu0 0.0
    %883 = vmatpush1.msra.mxu0 0.0
    %884 = vmatprep.subr.mxu0 0.0
    %885 = vmatpush1.msra.mxu0 0.0
    %886 = vmatprep.subr.mxu0 0.0
    %887 = vmatpush1.msra.mxu0 0.0
    %888 = vmatprep.subr.mxu0 0.0
    %889 = vmatpush1.msra.mxu0 0.0
    %890 = vmatprep.subr.mxu0 0.0
    %891 = vmatpush1.msra.mxu0 0.0
    %892 = vmatprep.subr.mxu0 0.0
    %893 = vmatpush1.msra.mxu0 0.0
    %894 = vmatprep.subr.mxu0 0.0
    %895 = vmatpush1.msra.mxu0 0.0
    %896 = vmatprep.subr.mxu0 0.0
    %897 = vmatpush1.msra.mxu0 0.0
    %898 = vmatprep.subr.mxu0 0.0
    %899 = vmatpush1.msra.mxu0 0.0
    %900 = vmatprep.mubr.f32.mxu0 0.0
    %901 = vmatmul.mubr.f32.gmra.mrb[0].mxu0 %v562
    %v902 = vpop.f32.mrb[0].mxu0
    %v903 = vadd.f32 0.0, %v902
    %v904 = vpop.f32.mrb[0].mxu0
    %905 = vmatprep.mubr.f32.mxu0 0.0
    %906 = vmatmul.mubr.f32.gmra.mrb[0].mxu0 %v565
    %v907 = vpop.f32.mrb[0].mxu0
    %v908 = vadd.f32 0.0, %v907
    %v909 = vpop.f32.mrb[0].mxu0
    %910 = vmatprep.mubr.f32.mxu0 0.0
    %911 = vmatmul.mubr.f32.gmra.mrb[0].mxu0 %v568
    %v912 = vpop.f32.mrb[0].mxu0
    %v913 = vadd.f32 0.0, %v912
    %v914 = vpop.f32.mrb[0].mxu0
    %915 = vmatprep.mubr.f32.mxu0 0.0
    %916 = vmatmul.mubr.f32.gmra.mrb[0].mxu0 %v571
    %v917 = vpop.f32.mrb[0].mxu0
    %v918 = vadd.f32 0.0, %v917
    %v919 = vpop.f32.mrb[0].mxu0
    %920 = vdwg.mxu0
    %921 = vmatprep.subr.mxu0 0.0
    %922 = vmatpush1.msra.mxu0 %v640
    %923 = vmatprep.subr.mxu0 0.0
    %924 = vmatpush1.msra.mxu0 %v645
    %925 = vmatprep.subr.mxu0 0.0
    %926 = vmatpush1.msra.mxu0 %v650
    %927 = vmatprep.subr.mxu0 0.0
    %928 = vmatpush1.msra.mxu0 %v655
    %929 = vmatprep.subr.mxu0 0.0
    %930 = vmatpush1.msra.mxu0 %v728
    %931 = vmatprep.subr.mxu0 0.0
    %932 = vmatpush1.msra.mxu0 %v733
    %933 = vmatprep.subr.mxu0 0.0
    %934 = vmatpush1.msra.mxu0 %v738
    %935 = vmatprep.subr.mxu0 0.0
    %936 = vmatpush1.msra.mxu0 %v743
    %937 = vmatprep.subr.mxu0 0.0
    %938 = vmatpush1.msra.mxu0 %v816
    %939 = vmatprep.subr.mxu0 0.0
    %940 = vmatpush1.msra.mxu0 %v821
    %941 = vmatprep.subr.mxu0 0.0
    %942 = vmatpush1.msra.mxu0 %v826
    %943 = vmatprep.subr.mxu0 0.0
    %944 = vmatpush1.msra.mxu0 %v831
    %945 = vmatprep.subr.mxu0 0.0
    %946 = vmatpush1.msra.mxu0 0.0
    %947 = vmatprep.subr.mxu0 0.0
    %948 = vmatpush1.msra.mxu0 0.0
    %949 = vmatprep.subr.mxu0 0.0
    %950 = vmatpush1.msra.mxu0 0.0
    %951 = vmatprep.subr.mxu0 0.0
    %952 = vmatpush1.msra.mxu0 0.0
    %953 = vmatprep.subr.mxu0 0.0
    %954 = vmatpush1.msra.mxu0 0.0
    %955 = vmatprep.subr.mxu0 0.0
    %956 = vmatpush1.msra.mxu0 0.0
    %957 = vmatprep.subr.mxu0 0.0
    %958 = vmatpush1.msra.mxu0 0.0
    %959 = vmatprep.subr.mxu0 0.0
    %960 = vmatpush1.msra.mxu0 0.0
    %961 = vmatprep.subr.mxu0 0.0
    %962 = vmatpush1.msra.mxu0 0.0
    %963 = vmatprep.subr.mxu0 0.0
    %964 = vmatpush1.msra.mxu0 0.0
    %965 = vmatprep.subr.mxu0 0.0
    %966 = vmatpush1.msra.mxu0 0.0
    %967 = vmatprep.subr.mxu0 0.0
    %968 = vmatpush1.msra.mxu0 0.0
    %969 = vmatprep.subr.mxu0 0.0
    %970 = vmatpush1.msra.mxu0 0.0
    %971 = vmatprep.subr.mxu0 0.0
    %972 = vmatpush1.msra.mxu0 0.0
    %973 = vmatprep.subr.mxu0 0.0
    %974 = vmatpush1.msra.mxu0 0.0
    %975 = vmatprep.subr.mxu0 0.0
    %976 = vmatpush1.msra.mxu0 0.0
    %977 = vmatprep.subr.mxu0 0.0
    %978 = vmatpush1.msra.mxu0 0.0
    %979 = vmatprep.subr.mxu0 0.0
    %980 = vmatpush1.msra.mxu0 0.0
    %981 = vmatprep.subr.mxu0 0.0
    %982 = vmatpush1.msra.mxu0 0.0
    %983 = vmatprep.subr.mxu0 0.0
    %984 = vmatpush1.msra.mxu0 0.0
    %985 = vmatprep.mubr.f32.mxu0 0.0
    %986 = vmatmul.mubr.f32.gmra.mrb[0].mxu0 %v447
    %v987 = vpop.f32.mrb[0].mxu0
    %v988 = vadd.f32 %v903, %v987
    %v989 = vpop.f32.mrb[0].mxu0
    %990 = vmatprep.mubr.f32.mxu0 0.0
    %991 = vmatmul.mubr.f32.gmra.mrb[0].mxu0 %v450
    %v992 = vpop.f32.mrb[0].mxu0
    %v993 = vadd.f32 %v908, %v992
    %v994 = vpop.f32.mrb[0].mxu0
    %995 = vmatprep.mubr.f32.mxu0 0.0
    %996 = vmatmul.mubr.f32.gmra.mrb[0].mxu0 %v453
    %v997 = vpop.f32.mrb[0].mxu0
    %v998 = vadd.f32 %v913, %v997
    %v999 = vpop.f32.mrb[0].mxu0
    %1000 = vmatprep.mubr.f32.mxu0 0.0
    %1001 = vmatmul.mubr.f32.gmra.mrb[0].mxu0 %v456
    %v1002 = vpop.f32.mrb[0].mxu0
    %v1003 = vadd.f32 %v918, %v1002
    %v1004 = vpop.f32.mrb[0].mxu0
    %1005 = vdwg.mxu0
    %v1006 = vld [vmem:[%s7] sm:$0x1]
    %v1008 = vlaneseq
    %v1009 = vshrl.u32 %v1008, 7
    %v1010 = vsub.s32 0, %v1009
    %v1011 = vrot.slane %v1006, %v1010
    %v1013 = vadd.f32 %v988, %v1011
    %v1014 = vadd.f32 %v993, %v1011
    %v1015 = vadd.f32 %v998, %v1011
    %v1016 = vadd.f32 %v1003, %v1011
    %v1017 = vmax.f32 %v1013, 0.0
    %v1018 = vmax.f32 %v1014, 0.0
    %v1019 = vmax.f32 %v1015, 0.0
    %v1020 = vmax.f32 %v1016, 0.0
    %v1021 = vld [vmem:[%s8] sm:$0x3]
    %vm1022 = vcmask 261120
    %v1024 = vsel %vm1022, %v1021, 0
    %1026 = vmatprep.subr.mxu0 0.0
    %1027 = vmatpush1.msra.mxu0 %v1017
    %1028 = vmatprep.subr.mxu0 0.0
    %1029 = vmatpush1.msra.mxu0 %v1018
    %1030 = vmatprep.subr.mxu0 0.0
    %1031 = vmatpush1.msra.mxu0 %v1019
    %1032 = vmatprep.subr.mxu0 0.0
    %1033 = vmatpush1.msra.mxu0 %v1020
    %1034 = vmatprep.subr.mxu0 0.0
    %1035 = vmatpush1.msra.mxu0 0.0
    %1036 = vmatprep.subr.mxu0 0.0
    %1037 = vmatpush1.msra.mxu0 0.0
    %1038 = vmatprep.subr.mxu0 0.0
    %1039 = vmatpush1.msra.mxu0 0.0
    %1040 = vmatprep.subr.mxu0 0.0
    %1041 = vmatpush1.msra.mxu0 0.0
    %1042 = vmatprep.subr.mxu0 0.0
    %1043 = vmatpush1.msra.mxu0 0.0
    %1044 = vmatprep.subr.mxu0 0.0
    %1045 = vmatpush1.msra.mxu0 0.0
    %1046 = vmatprep.subr.mxu0 0.0
    %1047 = vmatpush1.msra.mxu0 0.0
    %1048 = vmatprep.subr.mxu0 0.0
    %1049 = vmatpush1.msra.mxu0 0.0
    %1050 = vmatprep.subr.mxu0 0.0
    %1051 = vmatpush1.msra.mxu0 0.0
    %1052 = vmatprep.subr.mxu0 0.0
    %1053 = vmatpush1.msra.mxu0 0.0
    %1054 = vmatprep.subr.mxu0 0.0
    %1055 = vmatpush1.msra.mxu0 0.0
    %1056 = vmatprep.subr.mxu0 0.0
    %1057 = vmatpush1.msra.mxu0 0.0
    %1058 = vmatprep.subr.mxu0 0.0
    %1059 = vmatpush1.msra.mxu0 0.0
    %1060 = vmatprep.subr.mxu0 0.0
    %1061 = vmatpush1.msra.mxu0 0.0
    %1062 = vmatprep.subr.mxu0 0.0
    %1063 = vmatpush1.msra.mxu0 0.0
    %1064 = vmatprep.subr.mxu0 0.0
    %1065 = vmatpush1.msra.mxu0 0.0
    %1066 = vmatprep.subr.mxu0 0.0
    %1067 = vmatpush1.msra.mxu0 0.0
    %1068 = vmatprep.subr.mxu0 0.0
    %1069 = vmatpush1.msra.mxu0 0.0
    %1070 = vmatprep.subr.mxu0 0.0
    %1071 = vmatpush1.msra.mxu0 0.0
    %1072 = vmatprep.subr.mxu0 0.0
    %1073 = vmatpush1.msra.mxu0 0.0
    %1074 = vmatprep.subr.mxu0 0.0
    %1075 = vmatpush1.msra.mxu0 0.0
    %1076 = vmatprep.subr.mxu0 0.0
    %1077 = vmatpush1.msra.mxu0 0.0
    %1078 = vmatprep.subr.mxu0 0.0
    %1079 = vmatpush1.msra.mxu0 0.0
    %1080 = vmatprep.subr.mxu0 0.0
    %1081 = vmatpush1.msra.mxu0 0.0
    %1082 = vmatprep.subr.mxu0 0.0
    %1083 = vmatpush1.msra.mxu0 0.0
    %1084 = vmatprep.subr.mxu0 0.0
    %1085 = vmatpush1.msra.mxu0 0.0
    %1086 = vmatprep.subr.mxu0 0.0
    %1087 = vmatpush1.msra.mxu0 0.0
    %1088 = vmatprep.subr.mxu0 0.0
    %1089 = vmatpush1.msra.mxu0 0.0
    %1090 = vmatprep.mubr.f32.mxu0 0.0
    %1091 = vmatmul.mubr.f32.gmra.mrb[0].mxu0 %v1024
    %v1092 = vpop.f32.mrb[0].mxu0
    %v1093 = vadd.f32 0.0, %v1092
    %v1094 = vpop.f32.mrb[0].mxu0
    %1095 = vdwg.mxu0
    %v1096 = vld [vmem:[%s9] sm:$0xff]
    %v1097 = vld [vmem:[%s9 + $0x8] sm:$0xff]
    %v1098 = vld [vmem:[%s10] sm:$0x1]
    %v1100 = vlaneseq
    %v1101 = vshrl.u32 %v1100, 7
    %v1102 = vsub.s32 0, %v1101
    %v1103 = vrot.slane %v1098, %v1102
    %v1106 = vsel %vm560, %v1093, 0
    %1108 = vmatprep.subr.mxu0 0.0
    %1109 = vmatpush1.msra.mxu0 %v1096
    %1110 = vmatprep.subr.mxu0 0.0
    %1111 = vmatpush1.msra.mxu0 %v1097
    %1112 = vmatprep.subr.mxu0 0.0
    %1113 = vmatpush1.msra.mxu0 0.0
    %1114 = vmatprep.subr.mxu0 0.0
    %1115 = vmatpush1.msra.mxu0 0.0
    %1116 = vmatprep.subr.mxu0 0.0
    %1117 = vmatpush1.msra.mxu0 0.0
    %1118 = vmatprep.subr.mxu0 0.0
    %1119 = vmatpush1.msra.mxu0 0.0
    %1120 = vmatprep.subr.mxu0 0.0
    %1121 = vmatpush1.msra.mxu0 0.0
    %1122 = vmatprep.subr.mxu0 0.0
    %1123 = vmatpush1.msra.mxu0 0.0
    %1124 = vmatprep.subr.mxu0 0.0
    %1125 = vmatpush1.msra.mxu0 0.0
    %1126 = vmatprep.subr.mxu0 0.0
    %1127 = vmatpush1.msra.mxu0 0.0
    %1128 = vmatprep.subr.mxu0 0.0
    %1129 = vmatpush1.msra.mxu0 0.0
    %1130 = vmatprep.subr.mxu0 0.0
    %1131 = vmatpush1.msra.mxu0 0.0
    %1132 = vmatprep.subr.mxu0 0.0
    %1133 = vmatpush1.msra.mxu0 0.0
    %1134 = vmatprep.subr.mxu0 0.0
    %1135 = vmatpush1.msra.mxu0 0.0
    %1136 = vmatprep.subr.mxu0 0.0
    %1137 = vmatpush1.msra.mxu0 0.0
    %1138 = vmatprep.subr.mxu0 0.0
    %1139 = vmatpush1.msra.mxu0 0.0
    %1140 = vmatprep.subr.mxu0 0.0
    %1141 = vmatpush1.msra.mxu0 0.0
    %1142 = vmatprep.subr.mxu0 0.0
    %1143 = vmatpush1.msra.mxu0 0.0
    %1144 = vmatprep.subr.mxu0 0.0
    %1145 = vmatpush1.msra.mxu0 0.0
    %1146 = vmatprep.subr.mxu0 0.0
    %1147 = vmatpush1.msra.mxu0 0.0
    %1148 = vmatprep.subr.mxu0 0.0
    %1149 = vmatpush1.msra.mxu0 0.0
    %1150 = vmatprep.subr.mxu0 0.0
    %1151 = vmatpush1.msra.mxu0 0.0
    %1152 = vmatprep.subr.mxu0 0.0
    %1153 = vmatpush1.msra.mxu0 0.0
    %1154 = vmatprep.subr.mxu0 0.0
    %1155 = vmatpush1.msra.mxu0 0.0
    %1156 = vmatprep.subr.mxu0 0.0
    %1157 = vmatpush1.msra.mxu0 0.0
    %1158 = vmatprep.subr.mxu0 0.0
    %1159 = vmatpush1.msra.mxu0 0.0
    %1160 = vmatprep.subr.mxu0 0.0
    %1161 = vmatpush1.msra.mxu0 0.0
    %1162 = vmatprep.subr.mxu0 0.0
    %1163 = vmatpush1.msra.mxu0 0.0
    %1164 = vmatprep.subr.mxu0 0.0
    %1165 = vmatpush1.msra.mxu0 0.0
    %1166 = vmatprep.subr.mxu0 0.0
    %1167 = vmatpush1.msra.mxu0 0.0
    %1168 = vmatprep.subr.mxu0 0.0
    %1169 = vmatpush1.msra.mxu0 0.0
    %1170 = vmatprep.subr.mxu0 0.0
    %1171 = vmatpush1.msra.mxu0 0.0
    %1172 = vmatprep.mubr.f32.mxu0 0.0
    %1173 = vmatmul.mubr.f32.gmra.mrb[0].mxu0 %v1106
    %v1174 = vpop.f32.mrb[0].mxu0
    %v1175 = vadd.f32 %v1103, %v1174
    %v1176 = vpop.f32.mrb[0].mxu0
    %1177 = vdwg.mxu0
    %vm1178 = vcmask 25600
    %1179 = vst.msk [vmem:[#allocation8] sm:$0x3] %vm1178, %v1175
    // Predicated region
    $region58: #{tpu_custom_call.1} parent=1 // pred_check
      _
    $region59: #{tpu_custom_call.1} parent=1 // pred_check_branch
      %1181 = sbr.rel (0) target = $region61
    $region60: #{tpu_custom_call.1} parent=1 // pred_region
      %s1183 = ssub.s32 32, 32
      %1184 = vsyncadd [#allocation4], %s1183
      %s1186 = sshll.u32 [#allocation8], 4
      %s1187 = int_to_ptr.vmem [resolvable:$true] %s1186
      %1189 = dma.vmem_to_hbm [thread:$0]  %s1187, 32, %s11, [#allocation4]
    $region61: #{tpu_custom_call.1} parent=1 // pred_fallthru
      _
    // Predicated region
    $region62: #{tpu_custom_call.1} parent=1 // pred_check
      _
    $region63: #{tpu_custom_call.1} parent=1 // pred_check_branch
      %1191 = sbr.rel (0) target = $region65
    $region64: #{tpu_custom_call.1} parent=1 // pred_region
      %1192 = dma.done [#allocation4], 32
    $region65: #{tpu_custom_call.1} parent=1 // pred_fallthru
      _
    %1193 = vsyncpa [#allocation3], 1
    %1194 = vsyncpa [#allocation6], 1
    %1195 = vsyncpa [#allocation4], 1

</llo_original>
